<compile_context>
chip_gen: v6e
topology: v6e:2x2x1
jax: 0.10.0
libtpu: 0.0.40
codegen_flags: <defaults>
</compile_context>

<pallas_src>
import jax
import jax.numpy as jnp
from jax.experimental import pallas as pl
from jax.experimental.pallas import tpu as pltpu

LANE = 128
DIMS = ((8, 6), (6, 4), (4, 1))  # (fan_in, fan_out) per layer, weights stored (in, out)


def _param_offsets():
    offs, o = [], 0
    for fi, fo in DIMS:
        offs.append((o, o + fi * fo))  # (weight offset, bias offset)
        o += fi * fo + fo
    return tuple(offs), o


_OFFS, _NPARAMS = _param_offsets()  # 87 f32 scalars total


def _round_up(a, b):
    return (a + b - 1) // b * b


def _sigmoid(z):
    # tanh-form sigmoid: one EUP op, keeps the divide off the VALU critical path.
    return 0.5 * (1.0 + jnp.tanh(0.5 * z))


def mlp_kernel(p_ref, x_ref, o_ref):
    # p_ref : SMEM (87,) f32  -- packed [w1|b1|w2|b2|w3|b3], weights row-major (in, out)
    # x_ref : VMEM (8, TN) f32 -- features on sublanes, batch on lanes
    # o_ref : VMEM (1, TN) f32 -- lane-dense output row
    x = x_ref[...]                                              # (8, TN)
    rows = [x[k:k + 1, :] for k in range(DIMS[0][0])]           # eight (1, TN) rows
    for (w_off, b_off), (fan_in, fan_out) in zip(_OFFS, DIMS):
        nxt = []
        for j in range(fan_out):
            # z[j, :] = sum_k w[k, j] * h[k, :] + b[j]   (unrolled VPU FMAs)
            z = rows[0] * p_ref[w_off + j]
            for k in range(1, fan_in):
                z = z + rows[k] * p_ref[w_off + k * fan_out + j]
            nxt.append(_sigmoid(z + p_ref[b_off + j]))
        rows = nxt
    o_ref[...] = rows[0]                                        # (1, TN)


def mlp_forward_pallas(x, packed, *, tile_n=2048):
    """x: (N, 8) f32; packed: (87,) f32. Returns (N, 1) f32."""
    n = x.shape[0]
    tn = min(tile_n, _round_up(max(n, 1), LANE))      # lane-aligned tile
    n_pad = _round_up(n, tn)
    x_t = jnp.zeros((DIMS[0][0], n_pad), jnp.float32).at[:, :n].set(
        x.astype(jnp.float32).T
    )
    out_t = pl.pallas_call(
        mlp_kernel,
        out_shape=jax.ShapeDtypeStruct((1, n_pad), jnp.float32),
        grid=(n_pad // tn,),
        in_specs=[
            pl.BlockSpec(memory_space=pltpu.MemorySpace.SMEM),   # packed params, resident
            pl.BlockSpec((DIMS[0][0], tn), lambda i: (0, i)),    # x tile: (8, TN)
        ],
        out_specs=pl.BlockSpec((1, tn), lambda i: (0, i)),       # out tile: (1, TN)
        compiler_params=pltpu.CompilerParams(
            dimension_semantics=("parallel",),                   # v7x: 2 cores split batch
        ),
    )(packed, x_t)
    return out_t[:, :n].T                                        # (N, 1)


def _unpack(packed):
    params, o = [], 0
    for fi, fo in DIMS:
        w = packed[o:o + fi * fo].reshape(fi, fo)
        o += fi * fo
        b = packed[o:o + fo]
        o += fo
        params += [w, b]
    return params


def mlp_forward_reference(x, packed):
    w1, b1, w2, b2, w3, b3 = _unpack(packed)
    h = jax.nn.sigmoid(x @ w1 + b1)
    h = jax.nn.sigmoid(h @ w2 + b2)
    return jax.nn.sigmoid(h @ w3 + b3)


def mlp_forward(x, packed, *, min_pallas_batch=0, tile_n=2048):
    # For tiny batches the fixed pallas_call overhead dominates (~100 FLOPs total),
    # so production code should route them to the fused XLA graph instead.
    if x.shape[0] < min_pallas_batch:
        return mlp_forward_reference(x, packed)
    return mlp_forward_pallas(x, packed, tile_n=tile_n)


def init_params(key):
    # Deterministic init mimicking torch.nn.Linear's U(-1/sqrt(fan_in), 1/sqrt(fan_in)),
    # stored in the matmul-friendly (in, out) layout and packed into one flat buffer.
    flats = []
    for i, (fi, fo) in enumerate(DIMS):
        kw, kb = jax.random.split(jax.random.fold_in(key, i))
        bound = 1.0 / (fi ** 0.5)
        w = jax.random.uniform(kw, (fi, fo), jnp.float32, -bound, bound)
        b = jax.random.uniform(kb, (fo,), jnp.float32, -bound, bound)
        flats += [w.reshape(-1), b]
    packed = jnp.concatenate(flats)
    assert packed.shape == (_NPARAMS,)
    return packed


if __name__ == "__main__":
    key = jax.random.PRNGKey(0)
    kx, kp = jax.random.split(key)
    batch = 8
    x = jax.random.normal(kx, (batch, 8), jnp.float32)
    packed = init_params(kp)

    out = mlp_forward(x, packed)          # min_pallas_batch=0 -> always use the kernel
    jax.block_until_ready(out)

    ref = mlp_forward_reference(x, packed)
    assert out.shape == (batch, 1)
    assert jnp.allclose(out, ref, atol=1e-5, rtol=1e-5)
    print("KERNEL_OK")
</pallas_src>

<mosaic_0001>
module attributes {stable_mosaic.version = 11 : i64} {
  func.func @mlp_kernel(%arg0: i32, %arg1: memref<87xf32, #tpu.memory_space<smem>>, %arg2: memref<8x128xf32, #tpu.memory_space<vmem>>, %arg3: memref<1x128xf32, #tpu.memory_space<vmem>>) attributes {dimension_semantics = [#tpu.dimension_semantics<parallel>], iteration_bounds = array<i64: 1>, scalar_prefetch = 0 : i64, scratch_operands = 0 : i64, tpu.core_type = #tpu.core_type<tc>, window_params = [{transform_indices = @transform_0, window_bounds = array<i64: 87>}, {transform_indices = @transform_1, window_bounds = array<i64: 8, 128>}, {transform_indices = @transform_2, window_bounds = array<i64: 1, 128>}]} {
    %c0 = arith.constant 0 : index
    %c0_0 = arith.constant 0 : index
    %0 = vector.load %arg2[%c0, %c0_0] : memref<8x128xf32, #tpu.memory_space<vmem>>, vector<8x128xf32>
    %1 = vector.extract_strided_slice %0 {offsets = [0, 0], sizes = [1, 128], strides = [1, 1]} : vector<8x128xf32> to vector<1x128xf32>
    %2 = vector.extract_strided_slice %0 {offsets = [1, 0], sizes = [1, 128], strides = [1, 1]} : vector<8x128xf32> to vector<1x128xf32>
    %3 = vector.extract_strided_slice %0 {offsets = [2, 0], sizes = [1, 128], strides = [1, 1]} : vector<8x128xf32> to vector<1x128xf32>
    %4 = vector.extract_strided_slice %0 {offsets = [3, 0], sizes = [1, 128], strides = [1, 1]} : vector<8x128xf32> to vector<1x128xf32>
    %5 = vector.extract_strided_slice %0 {offsets = [4, 0], sizes = [1, 128], strides = [1, 1]} : vector<8x128xf32> to vector<1x128xf32>
    %6 = vector.extract_strided_slice %0 {offsets = [5, 0], sizes = [1, 128], strides = [1, 1]} : vector<8x128xf32> to vector<1x128xf32>
    %7 = vector.extract_strided_slice %0 {offsets = [6, 0], sizes = [1, 128], strides = [1, 1]} : vector<8x128xf32> to vector<1x128xf32>
    %8 = vector.extract_strided_slice %0 {offsets = [7, 0], sizes = [1, 128], strides = [1, 1]} : vector<8x128xf32> to vector<1x128xf32>
    %c0_1 = arith.constant 0 : index
    %9 = memref.load %arg1[%c0_1] : memref<87xf32, #tpu.memory_space<smem>>
    %10 = vector.broadcast %9 : f32 to vector<1x128xf32>
    %11 = arith.mulf %1, %10 : vector<1x128xf32>
    %c6 = arith.constant 6 : index
    %12 = memref.load %arg1[%c6] : memref<87xf32, #tpu.memory_space<smem>>
    %13 = vector.broadcast %12 : f32 to vector<1x128xf32>
    %14 = arith.mulf %2, %13 : vector<1x128xf32>
    %15 = arith.addf %11, %14 : vector<1x128xf32>
    %c12 = arith.constant 12 : index
    %16 = memref.load %arg1[%c12] : memref<87xf32, #tpu.memory_space<smem>>
    %17 = vector.broadcast %16 : f32 to vector<1x128xf32>
    %18 = arith.mulf %3, %17 : vector<1x128xf32>
    %19 = arith.addf %15, %18 : vector<1x128xf32>
    %c18 = arith.constant 18 : index
    %20 = memref.load %arg1[%c18] : memref<87xf32, #tpu.memory_space<smem>>
    %21 = vector.broadcast %20 : f32 to vector<1x128xf32>
    %22 = arith.mulf %4, %21 : vector<1x128xf32>
    %23 = arith.addf %19, %22 : vector<1x128xf32>
    %c24 = arith.constant 24 : index
    %24 = memref.load %arg1[%c24] : memref<87xf32, #tpu.memory_space<smem>>
    %25 = vector.broadcast %24 : f32 to vector<1x128xf32>
    %26 = arith.mulf %5, %25 : vector<1x128xf32>
    %27 = arith.addf %23, %26 : vector<1x128xf32>
    %c30 = arith.constant 30 : index
    %28 = memref.load %arg1[%c30] : memref<87xf32, #tpu.memory_space<smem>>
    %29 = vector.broadcast %28 : f32 to vector<1x128xf32>
    %30 = arith.mulf %6, %29 : vector<1x128xf32>
    %31 = arith.addf %27, %30 : vector<1x128xf32>
    %c36 = arith.constant 36 : index
    %32 = memref.load %arg1[%c36] : memref<87xf32, #tpu.memory_space<smem>>
    %33 = vector.broadcast %32 : f32 to vector<1x128xf32>
    %34 = arith.mulf %7, %33 : vector<1x128xf32>
    %35 = arith.addf %31, %34 : vector<1x128xf32>
    %c42 = arith.constant 42 : index
    %36 = memref.load %arg1[%c42] : memref<87xf32, #tpu.memory_space<smem>>
    %37 = vector.broadcast %36 : f32 to vector<1x128xf32>
    %38 = arith.mulf %8, %37 : vector<1x128xf32>
    %39 = arith.addf %35, %38 : vector<1x128xf32>
    %c48 = arith.constant 48 : index
    %40 = memref.load %arg1[%c48] : memref<87xf32, #tpu.memory_space<smem>>
    %41 = vector.broadcast %40 : f32 to vector<1x128xf32>
    %42 = arith.addf %39, %41 : vector<1x128xf32>
    %cst = arith.constant 5.000000e-01 : f32
    %43 = vector.broadcast %cst : f32 to vector<1x128xf32>
    %44 = arith.mulf %43, %42 : vector<1x128xf32>
    %45 = math.tanh %44 : vector<1x128xf32>
    %cst_2 = arith.constant 1.000000e+00 : f32
    %46 = vector.broadcast %cst_2 : f32 to vector<1x128xf32>
    %47 = arith.addf %46, %45 : vector<1x128xf32>
    %cst_3 = arith.constant 5.000000e-01 : f32
    %48 = vector.broadcast %cst_3 : f32 to vector<1x128xf32>
    %49 = arith.mulf %48, %47 : vector<1x128xf32>
    %c1 = arith.constant 1 : index
    %50 = memref.load %arg1[%c1] : memref<87xf32, #tpu.memory_space<smem>>
    %51 = vector.broadcast %50 : f32 to vector<1x128xf32>
    %52 = arith.mulf %1, %51 : vector<1x128xf32>
    %c7 = arith.constant 7 : index
    %53 = memref.load %arg1[%c7] : memref<87xf32, #tpu.memory_space<smem>>
    %54 = vector.broadcast %53 : f32 to vector<1x128xf32>
    %55 = arith.mulf %2, %54 : vector<1x128xf32>
    %56 = arith.addf %52, %55 : vector<1x128xf32>
    %c13 = arith.constant 13 : index
    %57 = memref.load %arg1[%c13] : memref<87xf32, #tpu.memory_space<smem>>
    %58 = vector.broadcast %57 : f32 to vector<1x128xf32>
    %59 = arith.mulf %3, %58 : vector<1x128xf32>
    %60 = arith.addf %56, %59 : vector<1x128xf32>
    %c19 = arith.constant 19 : index
    %61 = memref.load %arg1[%c19] : memref<87xf32, #tpu.memory_space<smem>>
    %62 = vector.broadcast %61 : f32 to vector<1x128xf32>
    %63 = arith.mulf %4, %62 : vector<1x128xf32>
    %64 = arith.addf %60, %63 : vector<1x128xf32>
    %c25 = arith.constant 25 : index
    %65 = memref.load %arg1[%c25] : memref<87xf32, #tpu.memory_space<smem>>
    %66 = vector.broadcast %65 : f32 to vector<1x128xf32>
    %67 = arith.mulf %5, %66 : vector<1x128xf32>
    %68 = arith.addf %64, %67 : vector<1x128xf32>
    %c31 = arith.constant 31 : index
    %69 = memref.load %arg1[%c31] : memref<87xf32, #tpu.memory_space<smem>>
    %70 = vector.broadcast %69 : f32 to vector<1x128xf32>
    %71 = arith.mulf %6, %70 : vector<1x128xf32>
    %72 = arith.addf %68, %71 : vector<1x128xf32>
    %c37 = arith.constant 37 : index
    %73 = memref.load %arg1[%c37] : memref<87xf32, #tpu.memory_space<smem>>
    %74 = vector.broadcast %73 : f32 to vector<1x128xf32>
    %75 = arith.mulf %7, %74 : vector<1x128xf32>
    %76 = arith.addf %72, %75 : vector<1x128xf32>
    %c43 = arith.constant 43 : index
    %77 = memref.load %arg1[%c43] : memref<87xf32, #tpu.memory_space<smem>>
    %78 = vector.broadcast %77 : f32 to vector<1x128xf32>
    %79 = arith.mulf %8, %78 : vector<1x128xf32>
    %80 = arith.addf %76, %79 : vector<1x128xf32>
    %c49 = arith.constant 49 : index
    %81 = memref.load %arg1[%c49] : memref<87xf32, #tpu.memory_space<smem>>
    %82 = vector.broadcast %81 : f32 to vector<1x128xf32>
    %83 = arith.addf %80, %82 : vector<1x128xf32>
    %cst_4 = arith.constant 5.000000e-01 : f32
    %84 = vector.broadcast %cst_4 : f32 to vector<1x128xf32>
    %85 = arith.mulf %84, %83 : vector<1x128xf32>
    %86 = math.tanh %85 : vector<1x128xf32>
    %cst_5 = arith.constant 1.000000e+00 : f32
    %87 = vector.broadcast %cst_5 : f32 to vector<1x128xf32>
    %88 = arith.addf %87, %86 : vector<1x128xf32>
    %cst_6 = arith.constant 5.000000e-01 : f32
    %89 = vector.broadcast %cst_6 : f32 to vector<1x128xf32>
    %90 = arith.mulf %89, %88 : vector<1x128xf32>
    %c2 = arith.constant 2 : index
    %91 = memref.load %arg1[%c2] : memref<87xf32, #tpu.memory_space<smem>>
    %92 = vector.broadcast %91 : f32 to vector<1x128xf32>
    %93 = arith.mulf %1, %92 : vector<1x128xf32>
    %c8 = arith.constant 8 : index
    %94 = memref.load %arg1[%c8] : memref<87xf32, #tpu.memory_space<smem>>
    %95 = vector.broadcast %94 : f32 to vector<1x128xf32>
    %96 = arith.mulf %2, %95 : vector<1x128xf32>
    %97 = arith.addf %93, %96 : vector<1x128xf32>
    %c14 = arith.constant 14 : index
    %98 = memref.load %arg1[%c14] : memref<87xf32, #tpu.memory_space<smem>>
    %99 = vector.broadcast %98 : f32 to vector<1x128xf32>
    %100 = arith.mulf %3, %99 : vector<1x128xf32>
    %101 = arith.addf %97, %100 : vector<1x128xf32>
    %c20 = arith.constant 20 : index
    %102 = memref.load %arg1[%c20] : memref<87xf32, #tpu.memory_space<smem>>
    %103 = vector.broadcast %102 : f32 to vector<1x128xf32>
    %104 = arith.mulf %4, %103 : vector<1x128xf32>
    %105 = arith.addf %101, %104 : vector<1x128xf32>
    %c26 = arith.constant 26 : index
    %106 = memref.load %arg1[%c26] : memref<87xf32, #tpu.memory_space<smem>>
    %107 = vector.broadcast %106 : f32 to vector<1x128xf32>
    %108 = arith.mulf %5, %107 : vector<1x128xf32>
    %109 = arith.addf %105, %108 : vector<1x128xf32>
    %c32 = arith.constant 32 : index
    %110 = memref.load %arg1[%c32] : memref<87xf32, #tpu.memory_space<smem>>
    %111 = vector.broadcast %110 : f32 to vector<1x128xf32>
    %112 = arith.mulf %6, %111 : vector<1x128xf32>
    %113 = arith.addf %109, %112 : vector<1x128xf32>
    %c38 = arith.constant 38 : index
    %114 = memref.load %arg1[%c38] : memref<87xf32, #tpu.memory_space<smem>>
    %115 = vector.broadcast %114 : f32 to vector<1x128xf32>
    %116 = arith.mulf %7, %115 : vector<1x128xf32>
    %117 = arith.addf %113, %116 : vector<1x128xf32>
    %c44 = arith.constant 44 : index
    %118 = memref.load %arg1[%c44] : memref<87xf32, #tpu.memory_space<smem>>
    %119 = vector.broadcast %118 : f32 to vector<1x128xf32>
    %120 = arith.mulf %8, %119 : vector<1x128xf32>
    %121 = arith.addf %117, %120 : vector<1x128xf32>
    %c50 = arith.constant 50 : index
    %122 = memref.load %arg1[%c50] : memref<87xf32, #tpu.memory_space<smem>>
    %123 = vector.broadcast %122 : f32 to vector<1x128xf32>
    %124 = arith.addf %121, %123 : vector<1x128xf32>
    %cst_7 = arith.constant 5.000000e-01 : f32
    %125 = vector.broadcast %cst_7 : f32 to vector<1x128xf32>
    %126 = arith.mulf %125, %124 : vector<1x128xf32>
    %127 = math.tanh %126 : vector<1x128xf32>
    %cst_8 = arith.constant 1.000000e+00 : f32
    %128 = vector.broadcast %cst_8 : f32 to vector<1x128xf32>
    %129 = arith.addf %128, %127 : vector<1x128xf32>
    %cst_9 = arith.constant 5.000000e-01 : f32
    %130 = vector.broadcast %cst_9 : f32 to vector<1x128xf32>
    %131 = arith.mulf %130, %129 : vector<1x128xf32>
    %c3 = arith.constant 3 : index
    %132 = memref.load %arg1[%c3] : memref<87xf32, #tpu.memory_space<smem>>
    %133 = vector.broadcast %132 : f32 to vector<1x128xf32>
    %134 = arith.mulf %1, %133 : vector<1x128xf32>
    %c9 = arith.constant 9 : index
    %135 = memref.load %arg1[%c9] : memref<87xf32, #tpu.memory_space<smem>>
    %136 = vector.broadcast %135 : f32 to vector<1x128xf32>
    %137 = arith.mulf %2, %136 : vector<1x128xf32>
    %138 = arith.addf %134, %137 : vector<1x128xf32>
    %c15 = arith.constant 15 : index
    %139 = memref.load %arg1[%c15] : memref<87xf32, #tpu.memory_space<smem>>
    %140 = vector.broadcast %139 : f32 to vector<1x128xf32>
    %141 = arith.mulf %3, %140 : vector<1x128xf32>
    %142 = arith.addf %138, %141 : vector<1x128xf32>
    %c21 = arith.constant 21 : index
    %143 = memref.load %arg1[%c21] : memref<87xf32, #tpu.memory_space<smem>>
    %144 = vector.broadcast %143 : f32 to vector<1x128xf32>
    %145 = arith.mulf %4, %144 : vector<1x128xf32>
    %146 = arith.addf %142, %145 : vector<1x128xf32>
    %c27 = arith.constant 27 : index
    %147 = memref.load %arg1[%c27] : memref<87xf32, #tpu.memory_space<smem>>
    %148 = vector.broadcast %147 : f32 to vector<1x128xf32>
    %149 = arith.mulf %5, %148 : vector<1x128xf32>
    %150 = arith.addf %146, %149 : vector<1x128xf32>
    %c33 = arith.constant 33 : index
    %151 = memref.load %arg1[%c33] : memref<87xf32, #tpu.memory_space<smem>>
    %152 = vector.broadcast %151 : f32 to vector<1x128xf32>
    %153 = arith.mulf %6, %152 : vector<1x128xf32>
    %154 = arith.addf %150, %153 : vector<1x128xf32>
    %c39 = arith.constant 39 : index
    %155 = memref.load %arg1[%c39] : memref<87xf32, #tpu.memory_space<smem>>
    %156 = vector.broadcast %155 : f32 to vector<1x128xf32>
    %157 = arith.mulf %7, %156 : vector<1x128xf32>
    %158 = arith.addf %154, %157 : vector<1x128xf32>
    %c45 = arith.constant 45 : index
    %159 = memref.load %arg1[%c45] : memref<87xf32, #tpu.memory_space<smem>>
    %160 = vector.broadcast %159 : f32 to vector<1x128xf32>
    %161 = arith.mulf %8, %160 : vector<1x128xf32>
    %162 = arith.addf %158, %161 : vector<1x128xf32>
    %c51 = arith.constant 51 : index
    %163 = memref.load %arg1[%c51] : memref<87xf32, #tpu.memory_space<smem>>
    %164 = vector.broadcast %163 : f32 to vector<1x128xf32>
    %165 = arith.addf %162, %164 : vector<1x128xf32>
    %cst_10 = arith.constant 5.000000e-01 : f32
    %166 = vector.broadcast %cst_10 : f32 to vector<1x128xf32>
    %167 = arith.mulf %166, %165 : vector<1x128xf32>
    %168 = math.tanh %167 : vector<1x128xf32>
    %cst_11 = arith.constant 1.000000e+00 : f32
    %169 = vector.broadcast %cst_11 : f32 to vector<1x128xf32>
    %170 = arith.addf %169, %168 : vector<1x128xf32>
    %cst_12 = arith.constant 5.000000e-01 : f32
    %171 = vector.broadcast %cst_12 : f32 to vector<1x128xf32>
    %172 = arith.mulf %171, %170 : vector<1x128xf32>
    %c4 = arith.constant 4 : index
    %173 = memref.load %arg1[%c4] : memref<87xf32, #tpu.memory_space<smem>>
    %174 = vector.broadcast %173 : f32 to vector<1x128xf32>
    %175 = arith.mulf %1, %174 : vector<1x128xf32>
    %c10 = arith.constant 10 : index
    %176 = memref.load %arg1[%c10] : memref<87xf32, #tpu.memory_space<smem>>
    %177 = vector.broadcast %176 : f32 to vector<1x128xf32>
    %178 = arith.mulf %2, %177 : vector<1x128xf32>
    %179 = arith.addf %175, %178 : vector<1x128xf32>
    %c16 = arith.constant 16 : index
    %180 = memref.load %arg1[%c16] : memref<87xf32, #tpu.memory_space<smem>>
    %181 = vector.broadcast %180 : f32 to vector<1x128xf32>
    %182 = arith.mulf %3, %181 : vector<1x128xf32>
    %183 = arith.addf %179, %182 : vector<1x128xf32>
    %c22 = arith.constant 22 : index
    %184 = memref.load %arg1[%c22] : memref<87xf32, #tpu.memory_space<smem>>
    %185 = vector.broadcast %184 : f32 to vector<1x128xf32>
    %186 = arith.mulf %4, %185 : vector<1x128xf32>
    %187 = arith.addf %183, %186 : vector<1x128xf32>
    %c28 = arith.constant 28 : index
    %188 = memref.load %arg1[%c28] : memref<87xf32, #tpu.memory_space<smem>>
    %189 = vector.broadcast %188 : f32 to vector<1x128xf32>
    %190 = arith.mulf %5, %189 : vector<1x128xf32>
    %191 = arith.addf %187, %190 : vector<1x128xf32>
    %c34 = arith.constant 34 : index
    %192 = memref.load %arg1[%c34] : memref<87xf32, #tpu.memory_space<smem>>
    %193 = vector.broadcast %192 : f32 to vector<1x128xf32>
    %194 = arith.mulf %6, %193 : vector<1x128xf32>
    %195 = arith.addf %191, %194 : vector<1x128xf32>
    %c40 = arith.constant 40 : index
    %196 = memref.load %arg1[%c40] : memref<87xf32, #tpu.memory_space<smem>>
    %197 = vector.broadcast %196 : f32 to vector<1x128xf32>
    %198 = arith.mulf %7, %197 : vector<1x128xf32>
    %199 = arith.addf %195, %198 : vector<1x128xf32>
    %c46 = arith.constant 46 : index
    %200 = memref.load %arg1[%c46] : memref<87xf32, #tpu.memory_space<smem>>
    %201 = vector.broadcast %200 : f32 to vector<1x128xf32>
    %202 = arith.mulf %8, %201 : vector<1x128xf32>
    %203 = arith.addf %199, %202 : vector<1x128xf32>
    %c52 = arith.constant 52 : index
    %204 = memref.load %arg1[%c52] : memref<87xf32, #tpu.memory_space<smem>>
    %205 = vector.broadcast %204 : f32 to vector<1x128xf32>
    %206 = arith.addf %203, %205 : vector<1x128xf32>
    %cst_13 = arith.constant 5.000000e-01 : f32
    %207 = vector.broadcast %cst_13 : f32 to vector<1x128xf32>
    %208 = arith.mulf %207, %206 : vector<1x128xf32>
    %209 = math.tanh %208 : vector<1x128xf32>
    %cst_14 = arith.constant 1.000000e+00 : f32
    %210 = vector.broadcast %cst_14 : f32 to vector<1x128xf32>
    %211 = arith.addf %210, %209 : vector<1x128xf32>
    %cst_15 = arith.constant 5.000000e-01 : f32
    %212 = vector.broadcast %cst_15 : f32 to vector<1x128xf32>
    %213 = arith.mulf %212, %211 : vector<1x128xf32>
    %c5 = arith.constant 5 : index
    %214 = memref.load %arg1[%c5] : memref<87xf32, #tpu.memory_space<smem>>
    %215 = vector.broadcast %214 : f32 to vector<1x128xf32>
    %216 = arith.mulf %1, %215 : vector<1x128xf32>
    %c11 = arith.constant 11 : index
    %217 = memref.load %arg1[%c11] : memref<87xf32, #tpu.memory_space<smem>>
    %218 = vector.broadcast %217 : f32 to vector<1x128xf32>
    %219 = arith.mulf %2, %218 : vector<1x128xf32>
    %220 = arith.addf %216, %219 : vector<1x128xf32>
    %c17 = arith.constant 17 : index
    %221 = memref.load %arg1[%c17] : memref<87xf32, #tpu.memory_space<smem>>
    %222 = vector.broadcast %221 : f32 to vector<1x128xf32>
    %223 = arith.mulf %3, %222 : vector<1x128xf32>
    %224 = arith.addf %220, %223 : vector<1x128xf32>
    %c23 = arith.constant 23 : index
    %225 = memref.load %arg1[%c23] : memref<87xf32, #tpu.memory_space<smem>>
    %226 = vector.broadcast %225 : f32 to vector<1x128xf32>
    %227 = arith.mulf %4, %226 : vector<1x128xf32>
    %228 = arith.addf %224, %227 : vector<1x128xf32>
    %c29 = arith.constant 29 : index
    %229 = memref.load %arg1[%c29] : memref<87xf32, #tpu.memory_space<smem>>
    %230 = vector.broadcast %229 : f32 to vector<1x128xf32>
    %231 = arith.mulf %5, %230 : vector<1x128xf32>
    %232 = arith.addf %228, %231 : vector<1x128xf32>
    %c35 = arith.constant 35 : index
    %233 = memref.load %arg1[%c35] : memref<87xf32, #tpu.memory_space<smem>>
    %234 = vector.broadcast %233 : f32 to vector<1x128xf32>
    %235 = arith.mulf %6, %234 : vector<1x128xf32>
    %236 = arith.addf %232, %235 : vector<1x128xf32>
    %c41 = arith.constant 41 : index
    %237 = memref.load %arg1[%c41] : memref<87xf32, #tpu.memory_space<smem>>
    %238 = vector.broadcast %237 : f32 to vector<1x128xf32>
    %239 = arith.mulf %7, %238 : vector<1x128xf32>
    %240 = arith.addf %236, %239 : vector<1x128xf32>
    %c47 = arith.constant 47 : index
    %241 = memref.load %arg1[%c47] : memref<87xf32, #tpu.memory_space<smem>>
    %242 = vector.broadcast %241 : f32 to vector<1x128xf32>
    %243 = arith.mulf %8, %242 : vector<1x128xf32>
    %244 = arith.addf %240, %243 : vector<1x128xf32>
    %c53 = arith.constant 53 : index
    %245 = memref.load %arg1[%c53] : memref<87xf32, #tpu.memory_space<smem>>
    %246 = vector.broadcast %245 : f32 to vector<1x128xf32>
    %247 = arith.addf %244, %246 : vector<1x128xf32>
    %cst_16 = arith.constant 5.000000e-01 : f32
    %248 = vector.broadcast %cst_16 : f32 to vector<1x128xf32>
    %249 = arith.mulf %248, %247 : vector<1x128xf32>
    %250 = math.tanh %249 : vector<1x128xf32>
    %cst_17 = arith.constant 1.000000e+00 : f32
    %251 = vector.broadcast %cst_17 : f32 to vector<1x128xf32>
    %252 = arith.addf %251, %250 : vector<1x128xf32>
    %cst_18 = arith.constant 5.000000e-01 : f32
    %253 = vector.broadcast %cst_18 : f32 to vector<1x128xf32>
    %254 = arith.mulf %253, %252 : vector<1x128xf32>
    %c54 = arith.constant 54 : index
    %255 = memref.load %arg1[%c54] : memref<87xf32, #tpu.memory_space<smem>>
    %256 = vector.broadcast %255 : f32 to vector<1x128xf32>
    %257 = arith.mulf %49, %256 : vector<1x128xf32>
    %c58 = arith.constant 58 : index
    %258 = memref.load %arg1[%c58] : memref<87xf32, #tpu.memory_space<smem>>
    %259 = vector.broadcast %258 : f32 to vector<1x128xf32>
    %260 = arith.mulf %90, %259 : vector<1x128xf32>
    %261 = arith.addf %257, %260 : vector<1x128xf32>
    %c62 = arith.constant 62 : index
    %262 = memref.load %arg1[%c62] : memref<87xf32, #tpu.memory_space<smem>>
    %263 = vector.broadcast %262 : f32 to vector<1x128xf32>
    %264 = arith.mulf %131, %263 : vector<1x128xf32>
    %265 = arith.addf %261, %264 : vector<1x128xf32>
    %c66 = arith.constant 66 : index
    %266 = memref.load %arg1[%c66] : memref<87xf32, #tpu.memory_space<smem>>
    %267 = vector.broadcast %266 : f32 to vector<1x128xf32>
    %268 = arith.mulf %172, %267 : vector<1x128xf32>
    %269 = arith.addf %265, %268 : vector<1x128xf32>
    %c70 = arith.constant 70 : index
    %270 = memref.load %arg1[%c70] : memref<87xf32, #tpu.memory_space<smem>>
    %271 = vector.broadcast %270 : f32 to vector<1x128xf32>
    %272 = arith.mulf %213, %271 : vector<1x128xf32>
    %273 = arith.addf %269, %272 : vector<1x128xf32>
    %c74 = arith.constant 74 : index
    %274 = memref.load %arg1[%c74] : memref<87xf32, #tpu.memory_space<smem>>
    %275 = vector.broadcast %274 : f32 to vector<1x128xf32>
    %276 = arith.mulf %254, %275 : vector<1x128xf32>
    %277 = arith.addf %273, %276 : vector<1x128xf32>
    %c78 = arith.constant 78 : index
    %278 = memref.load %arg1[%c78] : memref<87xf32, #tpu.memory_space<smem>>
    %279 = vector.broadcast %278 : f32 to vector<1x128xf32>
    %280 = arith.addf %277, %279 : vector<1x128xf32>
    %cst_19 = arith.constant 5.000000e-01 : f32
    %281 = vector.broadcast %cst_19 : f32 to vector<1x128xf32>
    %282 = arith.mulf %281, %280 : vector<1x128xf32>
    %283 = math.tanh %282 : vector<1x128xf32>
    %cst_20 = arith.constant 1.000000e+00 : f32
    %284 = vector.broadcast %cst_20 : f32 to vector<1x128xf32>
    %285 = arith.addf %284, %283 : vector<1x128xf32>
    %cst_21 = arith.constant 5.000000e-01 : f32
    %286 = vector.broadcast %cst_21 : f32 to vector<1x128xf32>
    %287 = arith.mulf %286, %285 : vector<1x128xf32>
    %c55 = arith.constant 55 : index
    %288 = memref.load %arg1[%c55] : memref<87xf32, #tpu.memory_space<smem>>
    %289 = vector.broadcast %288 : f32 to vector<1x128xf32>
    %290 = arith.mulf %49, %289 : vector<1x128xf32>
    %c59 = arith.constant 59 : index
    %291 = memref.load %arg1[%c59] : memref<87xf32, #tpu.memory_space<smem>>
    %292 = vector.broadcast %291 : f32 to vector<1x128xf32>
    %293 = arith.mulf %90, %292 : vector<1x128xf32>
    %294 = arith.addf %290, %293 : vector<1x128xf32>
    %c63 = arith.constant 63 : index
    %295 = memref.load %arg1[%c63] : memref<87xf32, #tpu.memory_space<smem>>
    %296 = vector.broadcast %295 : f32 to vector<1x128xf32>
    %297 = arith.mulf %131, %296 : vector<1x128xf32>
    %298 = arith.addf %294, %297 : vector<1x128xf32>
    %c67 = arith.constant 67 : index
    %299 = memref.load %arg1[%c67] : memref<87xf32, #tpu.memory_space<smem>>
    %300 = vector.broadcast %299 : f32 to vector<1x128xf32>
    %301 = arith.mulf %172, %300 : vector<1x128xf32>
    %302 = arith.addf %298, %301 : vector<1x128xf32>
    %c71 = arith.constant 71 : index
    %303 = memref.load %arg1[%c71] : memref<87xf32, #tpu.memory_space<smem>>
    %304 = vector.broadcast %303 : f32 to vector<1x128xf32>
    %305 = arith.mulf %213, %304 : vector<1x128xf32>
    %306 = arith.addf %302, %305 : vector<1x128xf32>
    %c75 = arith.constant 75 : index
    %307 = memref.load %arg1[%c75] : memref<87xf32, #tpu.memory_space<smem>>
    %308 = vector.broadcast %307 : f32 to vector<1x128xf32>
    %309 = arith.mulf %254, %308 : vector<1x128xf32>
    %310 = arith.addf %306, %309 : vector<1x128xf32>
    %c79 = arith.constant 79 : index
    %311 = memref.load %arg1[%c79] : memref<87xf32, #tpu.memory_space<smem>>
    %312 = vector.broadcast %311 : f32 to vector<1x128xf32>
    %313 = arith.addf %310, %312 : vector<1x128xf32>
    %cst_22 = arith.constant 5.000000e-01 : f32
    %314 = vector.broadcast %cst_22 : f32 to vector<1x128xf32>
    %315 = arith.mulf %314, %313 : vector<1x128xf32>
    %316 = math.tanh %315 : vector<1x128xf32>
    %cst_23 = arith.constant 1.000000e+00 : f32
    %317 = vector.broadcast %cst_23 : f32 to vector<1x128xf32>
    %318 = arith.addf %317, %316 : vector<1x128xf32>
    %cst_24 = arith.constant 5.000000e-01 : f32
    %319 = vector.broadcast %cst_24 : f32 to vector<1x128xf32>
    %320 = arith.mulf %319, %318 : vector<1x128xf32>
    %c56 = arith.constant 56 : index
    %321 = memref.load %arg1[%c56] : memref<87xf32, #tpu.memory_space<smem>>
    %322 = vector.broadcast %321 : f32 to vector<1x128xf32>
    %323 = arith.mulf %49, %322 : vector<1x128xf32>
    %c60 = arith.constant 60 : index
    %324 = memref.load %arg1[%c60] : memref<87xf32, #tpu.memory_space<smem>>
    %325 = vector.broadcast %324 : f32 to vector<1x128xf32>
    %326 = arith.mulf %90, %325 : vector<1x128xf32>
    %327 = arith.addf %323, %326 : vector<1x128xf32>
    %c64 = arith.constant 64 : index
    %328 = memref.load %arg1[%c64] : memref<87xf32, #tpu.memory_space<smem>>
    %329 = vector.broadcast %328 : f32 to vector<1x128xf32>
    %330 = arith.mulf %131, %329 : vector<1x128xf32>
    %331 = arith.addf %327, %330 : vector<1x128xf32>
    %c68 = arith.constant 68 : index
    %332 = memref.load %arg1[%c68] : memref<87xf32, #tpu.memory_space<smem>>
    %333 = vector.broadcast %332 : f32 to vector<1x128xf32>
    %334 = arith.mulf %172, %333 : vector<1x128xf32>
    %335 = arith.addf %331, %334 : vector<1x128xf32>
    %c72 = arith.constant 72 : index
    %336 = memref.load %arg1[%c72] : memref<87xf32, #tpu.memory_space<smem>>
    %337 = vector.broadcast %336 : f32 to vector<1x128xf32>
    %338 = arith.mulf %213, %337 : vector<1x128xf32>
    %339 = arith.addf %335, %338 : vector<1x128xf32>
    %c76 = arith.constant 76 : index
    %340 = memref.load %arg1[%c76] : memref<87xf32, #tpu.memory_space<smem>>
    %341 = vector.broadcast %340 : f32 to vector<1x128xf32>
    %342 = arith.mulf %254, %341 : vector<1x128xf32>
    %343 = arith.addf %339, %342 : vector<1x128xf32>
    %c80 = arith.constant 80 : index
    %344 = memref.load %arg1[%c80] : memref<87xf32, #tpu.memory_space<smem>>
    %345 = vector.broadcast %344 : f32 to vector<1x128xf32>
    %346 = arith.addf %343, %345 : vector<1x128xf32>
    %cst_25 = arith.constant 5.000000e-01 : f32
    %347 = vector.broadcast %cst_25 : f32 to vector<1x128xf32>
    %348 = arith.mulf %347, %346 : vector<1x128xf32>
    %349 = math.tanh %348 : vector<1x128xf32>
    %cst_26 = arith.constant 1.000000e+00 : f32
    %350 = vector.broadcast %cst_26 : f32 to vector<1x128xf32>
    %351 = arith.addf %350, %349 : vector<1x128xf32>
    %cst_27 = arith.constant 5.000000e-01 : f32
    %352 = vector.broadcast %cst_27 : f32 to vector<1x128xf32>
    %353 = arith.mulf %352, %351 : vector<1x128xf32>
    %c57 = arith.constant 57 : index
    %354 = memref.load %arg1[%c57] : memref<87xf32, #tpu.memory_space<smem>>
    %355 = vector.broadcast %354 : f32 to vector<1x128xf32>
    %356 = arith.mulf %49, %355 : vector<1x128xf32>
    %c61 = arith.constant 61 : index
    %357 = memref.load %arg1[%c61] : memref<87xf32, #tpu.memory_space<smem>>
    %358 = vector.broadcast %357 : f32 to vector<1x128xf32>
    %359 = arith.mulf %90, %358 : vector<1x128xf32>
    %360 = arith.addf %356, %359 : vector<1x128xf32>
    %c65 = arith.constant 65 : index
    %361 = memref.load %arg1[%c65] : memref<87xf32, #tpu.memory_space<smem>>
    %362 = vector.broadcast %361 : f32 to vector<1x128xf32>
    %363 = arith.mulf %131, %362 : vector<1x128xf32>
    %364 = arith.addf %360, %363 : vector<1x128xf32>
    %c69 = arith.constant 69 : index
    %365 = memref.load %arg1[%c69] : memref<87xf32, #tpu.memory_space<smem>>
    %366 = vector.broadcast %365 : f32 to vector<1x128xf32>
    %367 = arith.mulf %172, %366 : vector<1x128xf32>
    %368 = arith.addf %364, %367 : vector<1x128xf32>
    %c73 = arith.constant 73 : index
    %369 = memref.load %arg1[%c73] : memref<87xf32, #tpu.memory_space<smem>>
    %370 = vector.broadcast %369 : f32 to vector<1x128xf32>
    %371 = arith.mulf %213, %370 : vector<1x128xf32>
    %372 = arith.addf %368, %371 : vector<1x128xf32>
    %c77 = arith.constant 77 : index
    %373 = memref.load %arg1[%c77] : memref<87xf32, #tpu.memory_space<smem>>
    %374 = vector.broadcast %373 : f32 to vector<1x128xf32>
    %375 = arith.mulf %254, %374 : vector<1x128xf32>
    %376 = arith.addf %372, %375 : vector<1x128xf32>
    %c81 = arith.constant 81 : index
    %377 = memref.load %arg1[%c81] : memref<87xf32, #tpu.memory_space<smem>>
    %378 = vector.broadcast %377 : f32 to vector<1x128xf32>
    %379 = arith.addf %376, %378 : vector<1x128xf32>
    %cst_28 = arith.constant 5.000000e-01 : f32
    %380 = vector.broadcast %cst_28 : f32 to vector<1x128xf32>
    %381 = arith.mulf %380, %379 : vector<1x128xf32>
    %382 = math.tanh %381 : vector<1x128xf32>
    %cst_29 = arith.constant 1.000000e+00 : f32
    %383 = vector.broadcast %cst_29 : f32 to vector<1x128xf32>
    %384 = arith.addf %383, %382 : vector<1x128xf32>
    %cst_30 = arith.constant 5.000000e-01 : f32
    %385 = vector.broadcast %cst_30 : f32 to vector<1x128xf32>
    %386 = arith.mulf %385, %384 : vector<1x128xf32>
    %c82 = arith.constant 82 : index
    %387 = memref.load %arg1[%c82] : memref<87xf32, #tpu.memory_space<smem>>
    %388 = vector.broadcast %387 : f32 to vector<1x128xf32>
    %389 = arith.mulf %287, %388 : vector<1x128xf32>
    %c83 = arith.constant 83 : index
    %390 = memref.load %arg1[%c83] : memref<87xf32, #tpu.memory_space<smem>>
    %391 = vector.broadcast %390 : f32 to vector<1x128xf32>
    %392 = arith.mulf %320, %391 : vector<1x128xf32>
    %393 = arith.addf %389, %392 : vector<1x128xf32>
    %c84 = arith.constant 84 : index
    %394 = memref.load %arg1[%c84] : memref<87xf32, #tpu.memory_space<smem>>
    %395 = vector.broadcast %394 : f32 to vector<1x128xf32>
    %396 = arith.mulf %353, %395 : vector<1x128xf32>
    %397 = arith.addf %393, %396 : vector<1x128xf32>
    %c85 = arith.constant 85 : index
    %398 = memref.load %arg1[%c85] : memref<87xf32, #tpu.memory_space<smem>>
    %399 = vector.broadcast %398 : f32 to vector<1x128xf32>
    %400 = arith.mulf %386, %399 : vector<1x128xf32>
    %401 = arith.addf %397, %400 : vector<1x128xf32>
    %c86 = arith.constant 86 : index
    %402 = memref.load %arg1[%c86] : memref<87xf32, #tpu.memory_space<smem>>
    %403 = vector.broadcast %402 : f32 to vector<1x128xf32>
    %404 = arith.addf %401, %403 : vector<1x128xf32>
    %cst_31 = arith.constant 5.000000e-01 : f32
    %405 = vector.broadcast %cst_31 : f32 to vector<1x128xf32>
    %406 = arith.mulf %405, %404 : vector<1x128xf32>
    %407 = math.tanh %406 : vector<1x128xf32>
    %cst_32 = arith.constant 1.000000e+00 : f32
    %408 = vector.broadcast %cst_32 : f32 to vector<1x128xf32>
    %409 = arith.addf %408, %407 : vector<1x128xf32>
    %cst_33 = arith.constant 5.000000e-01 : f32
    %410 = vector.broadcast %cst_33 : f32 to vector<1x128xf32>
    %411 = arith.mulf %410, %409 : vector<1x128xf32>
    %c0_34 = arith.constant 0 : index
    %c0_35 = arith.constant 0 : index
    %412 = vector.load %arg3[%c0_34, %c0_35] : memref<1x128xf32, #tpu.memory_space<vmem>>, vector<1x128xf32>
    tpu.vector_store %arg3[%c0_34, %c0_35], %411 {strides = array<i32>} : memref<1x128xf32, #tpu.memory_space<vmem>>, vector<1x128xf32>,
    return
  }
  func.func @transform_0(%arg0: i32) -> i32 {
    %c0_i32 = arith.constant 0 : i32
    %c0_i32_0 = arith.constant 0 : i32
    return %c0_i32 : i32
  }
  func.func @transform_1(%arg0: i32) -> (i32, i32) {
    %c0_i32 = arith.constant 0 : i32
    %c0_i32_0 = arith.constant 0 : i32
    return %c0_i32, %arg0 : i32, i32
  }
  func.func @transform_2(%arg0: i32) -> (i32, i32) {
    %c0_i32 = arith.constant 0 : i32
    %c0_i32_0 = arith.constant 0 : i32
    return %c0_i32, %arg0 : i32, i32
  }
}

</mosaic_0001>

<llo_original>
// kernel: tpu_custom_call.1
$region0: #{tpu_custom_call.1}
  #allocation0 [shape = 'u32[]', space=smem, size = 0x4, offset = 0x4, fixed_abs, tag = 'smem constant byte address 0x4 - core index']
  #allocation1 [shape = 'u32[144,128]{1,0:T(1,128)}', space=vmem, size = 0x12000, scoped, tag = 'internal scratch']
  %s0 = inlined_call_operand.hbm [shape: f32[87], index: 0, kind: input, shape index: {}]
  %s1 = inlined_call_operand.hbm [shape: f32[8,128], index: 1, kind: input, shape index: {}]
  %s2 = inlined_call_operand.hbm [shape: f32[1,128], index: 2, kind: output, shape index: {}]
  %s3 = sld [smem:[#allocation0]]
  $region26: #{tpu_custom_call.1} parent=0
    _
  %s5 = ssub.s32 1, %s3
  %s6 = scalar_select 0, %s5, %s3
  $region1: #{tpu_custom_call.1} parent=0
    #allocation2 [shape = 'u8[512]{0}', space=smem, size = 0x200, scoped, tag = 'input window, operand 0, single buffered']
    #allocation3 [shape = 's32[1]{0}', space=sflag, size = 0x4, scoped, tag = 'scoped memory for tpu_custom_call.1']
    #allocation4 [shape = 's32[1]{0}', space=sflag, size = 0x4, scoped, tag = 'scoped memory for tpu_custom_call.1']
    #allocation5 [shape = 's32[1]{0}', space=sflag, size = 0x4, scoped, tag = 'scoped memory for tpu_custom_call.1']
    #allocation6 [shape = 'u8[4096]{0}', space=vmem, size = 0x1000, scoped, tag = 'input window, operand 1, single buffered']
    #allocation7 [shape = 'u8[512]{0}', space=vmem, size = 0x400, scoped, tag = 'output window, operand 0, single buffered']
    %7 = vsyncpa [#allocation5], 0
    %8 = vsyncpa [#allocation3], 0
    %9 = vsyncpa [#allocation4], 0
    // Predicated region
    $region2: #{tpu_custom_call.1} parent=1 // pred_check
      _
    $region3: #{tpu_custom_call.1} parent=1 // pred_check_branch
      %11 = sbr.rel (0) target = $region5
    $region4: #{tpu_custom_call.1} parent=1 // pred_region
      %s13 = ssub.s32 16, 16
      %14 = vsyncadd [#allocation5], %s13
      %17 = dma.hbm_to_smem %s0, 16, [#allocation2], [#allocation5]
    $region5: #{tpu_custom_call.1} parent=1 // pred_fallthru
      _
    // Predicated region
    $region6: #{tpu_custom_call.1} parent=1 // pred_check
      _
    $region7: #{tpu_custom_call.1} parent=1 // pred_check_branch
      %19 = sbr.rel (0) target = $region9
    $region8: #{tpu_custom_call.1} parent=1 // pred_region
      %s21 = ssub.s32 128, 128
      %22 = vsyncadd [#allocation3], %s21
      %s24 = sshll.u32 [#allocation6], 4
      %s25 = int_to_ptr.vmem [resolvable:$true] %s24
      %27 = dma.hbm_to_vmem [thread:$0]  %s1, 128, %s25, [#allocation3]
    $region9: #{tpu_custom_call.1} parent=1 // pred_fallthru
      _
    // Predicated region
    $region10: #{tpu_custom_call.1} parent=1 // pred_check
      _
    $region11: #{tpu_custom_call.1} parent=1 // pred_check_branch
      %29 = sbr.rel (0) target = $region13
    $region12: #{tpu_custom_call.1} parent=1 // pred_region
      %30 = dma.done [#allocation5], 16
    $region13: #{tpu_custom_call.1} parent=1 // pred_fallthru
      _
    // Predicated region
    $region14: #{tpu_custom_call.1} parent=1 // pred_check
      _
    $region15: #{tpu_custom_call.1} parent=1 // pred_check_branch
      %32 = sbr.rel (0) target = $region17
    $region16: #{tpu_custom_call.1} parent=1 // pred_region
      %33 = dma.done [#allocation3], 128
    $region17: #{tpu_custom_call.1} parent=1 // pred_fallthru
      _
    %34 = sfence
    %v35 = vld [vmem:[#allocation6] sm:$0xff]
    %s36 = sld [smem:[#allocation2]]
    %v37 = vstv %s36
    %v38 = vmul.f32 %v35, %v37
    %s39 = sld [smem:[#allocation2 + $0x6]]
    %v40 = vstv %s39
    %v41 = vmul.f32 %v35, %v40
    %v43 = vrot.slane %v41, 1
    %v45 = vadd.f32 %v38, %v43
    %s46 = sld [smem:[#allocation2 + $0xc]]
    %v47 = vstv %s46
    %v48 = vmul.f32 %v35, %v47
    %v50 = vrot.slane %v48, 2
    %v52 = vadd.f32 %v45, %v50
    %s53 = sld [smem:[#allocation2 + $0x12]]
    %v54 = vstv %s53
    %v55 = vmul.f32 %v35, %v54
    %v57 = vrot.slane %v55, 3
    %v59 = vadd.f32 %v52, %v57
    %s60 = sld [smem:[#allocation2 + $0x18]]
    %v61 = vstv %s60
    %v62 = vmul.f32 %v35, %v61
    %v64 = vrot.slane %v62, 4
    %v66 = vadd.f32 %v59, %v64
    %s67 = sld [smem:[#allocation2 + $0x1e]]
    %v68 = vstv %s67
    %v69 = vmul.f32 %v35, %v68
    %v71 = vrot.slane %v69, 5
    %v73 = vadd.f32 %v66, %v71
    %s74 = sld [smem:[#allocation2 + $0x24]]
    %v75 = vstv %s74
    %v76 = vmul.f32 %v35, %v75
    %v78 = vrot.slane %v76, 6
    %v80 = vadd.f32 %v73, %v78
    %s81 = sld [smem:[#allocation2 + $0x2a]]
    %v82 = vstv %s81
    %v83 = vmul.f32 %v35, %v82
    %v85 = vrot.slane %v83, 7
    %v87 = vadd.f32 %v80, %v85
    %s88 = sld [smem:[#allocation2 + $0x30]]
    %v89 = vstv %s88
    %v90 = vadd.f32 %v87, %v89
    %v91 = vmul.f32 %v90, 0.5
    %v92 = vtanh.pop %v91
    %v93 = vadd.f32 %v92, 1.0
    %v94 = vmul.f32 %v93, 0.5
    %s95 = sld [smem:[#allocation2 + $0x1]]
    %v96 = vstv %s95
    %v97 = vmul.f32 %v35, %v96
    %s98 = sld [smem:[#allocation2 + $0x7]]
    %v99 = vstv %s98
    %v100 = vmul.f32 %v35, %v99
    %v102 = vrot.slane %v100, 1
    %v104 = vadd.f32 %v97, %v102
    %s105 = sld [smem:[#allocation2 + $0xd]]
    %v106 = vstv %s105
    %v107 = vmul.f32 %v35, %v106
    %v109 = vrot.slane %v107, 2
    %v111 = vadd.f32 %v104, %v109
    %s112 = sld [smem:[#allocation2 + $0x13]]
    %v113 = vstv %s112
    %v114 = vmul.f32 %v35, %v113
    %v116 = vrot.slane %v114, 3
    %v118 = vadd.f32 %v111, %v116
    %s119 = sld [smem:[#allocation2 + $0x19]]
    %v120 = vstv %s119
    %v121 = vmul.f32 %v35, %v120
    %v123 = vrot.slane %v121, 4
    %v125 = vadd.f32 %v118, %v123
    %s126 = sld [smem:[#allocation2 + $0x1f]]
    %v127 = vstv %s126
    %v128 = vmul.f32 %v35, %v127
    %v130 = vrot.slane %v128, 5
    %v132 = vadd.f32 %v125, %v130
    %s133 = sld [smem:[#allocation2 + $0x25]]
    %v134 = vstv %s133
    %v135 = vmul.f32 %v35, %v134
    %v137 = vrot.slane %v135, 6
    %v139 = vadd.f32 %v132, %v137
    %s140 = sld [smem:[#allocation2 + $0x2b]]
    %v141 = vstv %s140
    %v142 = vmul.f32 %v35, %v141
    %v144 = vrot.slane %v142, 7
    %v146 = vadd.f32 %v139, %v144
    %s147 = sld [smem:[#allocation2 + $0x31]]
    %v148 = vstv %s147
    %v149 = vadd.f32 %v146, %v148
    %v150 = vmul.f32 %v149, 0.5
    %v151 = vtanh.pop %v150
    %v152 = vadd.f32 %v151, 1.0
    %v153 = vmul.f32 %v152, 0.5
    %s154 = sld [smem:[#allocation2 + $0x2]]
    %v155 = vstv %s154
    %v156 = vmul.f32 %v35, %v155
    %s157 = sld [smem:[#allocation2 + $0x8]]
    %v158 = vstv %s157
    %v159 = vmul.f32 %v35, %v158
    %v161 = vrot.slane %v159, 1
    %v163 = vadd.f32 %v156, %v161
    %s164 = sld [smem:[#allocation2 + $0xe]]
    %v165 = vstv %s164
    %v166 = vmul.f32 %v35, %v165
    %v168 = vrot.slane %v166, 2
    %v170 = vadd.f32 %v163, %v168
    %s171 = sld [smem:[#allocation2 + $0x14]]
    %v172 = vstv %s171
    %v173 = vmul.f32 %v35, %v172
    %v175 = vrot.slane %v173, 3
    %v177 = vadd.f32 %v170, %v175
    %s178 = sld [smem:[#allocation2 + $0x1a]]
    %v179 = vstv %s178
    %v180 = vmul.f32 %v35, %v179
    %v182 = vrot.slane %v180, 4
    %v184 = vadd.f32 %v177, %v182
    %s185 = sld [smem:[#allocation2 + $0x20]]
    %v186 = vstv %s185
    %v187 = vmul.f32 %v35, %v186
    %v189 = vrot.slane %v187, 5
    %v191 = vadd.f32 %v184, %v189
    %s192 = sld [smem:[#allocation2 + $0x26]]
    %v193 = vstv %s192
    %v194 = vmul.f32 %v35, %v193
    %v196 = vrot.slane %v194, 6
    %v198 = vadd.f32 %v191, %v196
    %s199 = sld [smem:[#allocation2 + $0x2c]]
    %v200 = vstv %s199
    %v201 = vmul.f32 %v35, %v200
    %v203 = vrot.slane %v201, 7
    %v205 = vadd.f32 %v198, %v203
    %s206 = sld [smem:[#allocation2 + $0x32]]
    %v207 = vstv %s206
    %v208 = vadd.f32 %v205, %v207
    %v209 = vmul.f32 %v208, 0.5
    %v210 = vtanh.pop %v209
    %v211 = vadd.f32 %v210, 1.0
    %v212 = vmul.f32 %v211, 0.5
    %s213 = sld [smem:[#allocation2 + $0x3]]
    %v214 = vstv %s213
    %v215 = vmul.f32 %v35, %v214
    %s216 = sld [smem:[#allocation2 + $0x9]]
    %v217 = vstv %s216
    %v218 = vmul.f32 %v35, %v217
    %v220 = vrot.slane %v218, 1
    %v222 = vadd.f32 %v215, %v220
    %s223 = sld [smem:[#allocation2 + $0xf]]
    %v224 = vstv %s223
    %v225 = vmul.f32 %v35, %v224
    %v227 = vrot.slane %v225, 2
    %v229 = vadd.f32 %v222, %v227
    %s230 = sld [smem:[#allocation2 + $0x15]]
    %v231 = vstv %s230
    %v232 = vmul.f32 %v35, %v231
    %v234 = vrot.slane %v232, 3
    %v236 = vadd.f32 %v229, %v234
    %s237 = sld [smem:[#allocation2 + $0x1b]]
    %v238 = vstv %s237
    %v239 = vmul.f32 %v35, %v238
    %v241 = vrot.slane %v239, 4
    %v243 = vadd.f32 %v236, %v241
    %s244 = sld [smem:[#allocation2 + $0x21]]
    %v245 = vstv %s244
    %v246 = vmul.f32 %v35, %v245
    %v248 = vrot.slane %v246, 5
    %v250 = vadd.f32 %v243, %v248
    %s251 = sld [smem:[#allocation2 + $0x27]]
    %v252 = vstv %s251
    %v253 = vmul.f32 %v35, %v252
    %v255 = vrot.slane %v253, 6
    %v257 = vadd.f32 %v250, %v255
    %s258 = sld [smem:[#allocation2 + $0x2d]]
    %v259 = vstv %s258
    %v260 = vmul.f32 %v35, %v259
    %v262 = vrot.slane %v260, 7
    %v264 = vadd.f32 %v257, %v262
    %s265 = sld [smem:[#allocation2 + $0x33]]
    %v266 = vstv %s265
    %v267 = vadd.f32 %v264, %v266
    %v268 = vmul.f32 %v267, 0.5
    %v269 = vtanh.pop %v268
    %v270 = vadd.f32 %v269, 1.0
    %v271 = vmul.f32 %v270, 0.5
    %s272 = sld [smem:[#allocation2 + $0x4]]
    %v273 = vstv %s272
    %v274 = vmul.f32 %v35, %v273
    %s275 = sld [smem:[#allocation2 + $0xa]]
    %v276 = vstv %s275
    %v277 = vmul.f32 %v35, %v276
    %v279 = vrot.slane %v277, 1
    %v281 = vadd.f32 %v274, %v279
    %s282 = sld [smem:[#allocation2 + $0x10]]
    %v283 = vstv %s282
    %v284 = vmul.f32 %v35, %v283
    %v286 = vrot.slane %v284, 2
    %v288 = vadd.f32 %v281, %v286
    %s289 = sld [smem:[#allocation2 + $0x16]]
    %v290 = vstv %s289
    %v291 = vmul.f32 %v35, %v290
    %v293 = vrot.slane %v291, 3
    %v295 = vadd.f32 %v288, %v293
    %s296 = sld [smem:[#allocation2 + $0x1c]]
    %v297 = vstv %s296
    %v298 = vmul.f32 %v35, %v297
    %v300 = vrot.slane %v298, 4
    %v302 = vadd.f32 %v295, %v300
    %s303 = sld [smem:[#allocation2 + $0x22]]
    %v304 = vstv %s303
    %v305 = vmul.f32 %v35, %v304
    %v307 = vrot.slane %v305, 5
    %v309 = vadd.f32 %v302, %v307
    %s310 = sld [smem:[#allocation2 + $0x28]]
    %v311 = vstv %s310
    %v312 = vmul.f32 %v35, %v311
    %v314 = vrot.slane %v312, 6
    %v316 = vadd.f32 %v309, %v314
    %s317 = sld [smem:[#allocation2 + $0x2e]]
    %v318 = vstv %s317
    %v319 = vmul.f32 %v35, %v318
    %v321 = vrot.slane %v319, 7
    %v323 = vadd.f32 %v316, %v321
    %s324 = sld [smem:[#allocation2 + $0x34]]
    %v325 = vstv %s324
    %v326 = vadd.f32 %v323, %v325
    %v327 = vmul.f32 %v326, 0.5
    %v328 = vtanh.pop %v327
    %v329 = vadd.f32 %v328, 1.0
    %v330 = vmul.f32 %v329, 0.5
    %s331 = sld [smem:[#allocation2 + $0x5]]
    %v332 = vstv %s331
    %v333 = vmul.f32 %v35, %v332
    %s334 = sld [smem:[#allocation2 + $0xb]]
    %v335 = vstv %s334
    %v336 = vmul.f32 %v35, %v335
    %v338 = vrot.slane %v336, 1
    %v340 = vadd.f32 %v333, %v338
    %s341 = sld [smem:[#allocation2 + $0x11]]
    %v342 = vstv %s341
    %v343 = vmul.f32 %v35, %v342
    %v345 = vrot.slane %v343, 2
    %v347 = vadd.f32 %v340, %v345
    %s348 = sld [smem:[#allocation2 + $0x17]]
    %v349 = vstv %s348
    %v350 = vmul.f32 %v35, %v349
    %v352 = vrot.slane %v350, 3
    %v354 = vadd.f32 %v347, %v352
    %s355 = sld [smem:[#allocation2 + $0x1d]]
    %v356 = vstv %s355
    %v357 = vmul.f32 %v35, %v356
    %v359 = vrot.slane %v357, 4
    %v361 = vadd.f32 %v354, %v359
    %s362 = sld [smem:[#allocation2 + $0x23]]
    %v363 = vstv %s362
    %v364 = vmul.f32 %v35, %v363
    %v366 = vrot.slane %v364, 5
    %v368 = vadd.f32 %v361, %v366
    %s369 = sld [smem:[#allocation2 + $0x29]]
    %v370 = vstv %s369
    %v371 = vmul.f32 %v35, %v370
    %v373 = vrot.slane %v371, 6
    %v375 = vadd.f32 %v368, %v373
    %s376 = sld [smem:[#allocation2 + $0x2f]]
    %v377 = vstv %s376
    %v378 = vmul.f32 %v35, %v377
    %v380 = vrot.slane %v378, 7
    %v382 = vadd.f32 %v375, %v380
    %s383 = sld [smem:[#allocation2 + $0x35]]
    %v384 = vstv %s383
    %v385 = vadd.f32 %v382, %v384
    %v386 = vmul.f32 %v385, 0.5
    %v387 = vtanh.pop %v386
    %v388 = vadd.f32 %v387, 1.0
    %v389 = vmul.f32 %v388, 0.5
    %s390 = sld [smem:[#allocation2 + $0x36]]
    %v391 = vstv %s390
    %v392 = vmul.f32 %v94, %v391
    %s393 = sld [smem:[#allocation2 + $0x3a]]
    %v394 = vstv %s393
    %v395 = vmul.f32 %v153, %v394
    %v396 = vadd.f32 %v392, %v395
    %s397 = sld [smem:[#allocation2 + $0x3e]]
    %v398 = vstv %s397
    %v399 = vmul.f32 %v212, %v398
    %v400 = vadd.f32 %v396, %v399
    %s401 = sld [smem:[#allocation2 + $0x42]]
    %v402 = vstv %s401
    %v403 = vmul.f32 %v271, %v402
    %v404 = vadd.f32 %v400, %v403
    %s405 = sld [smem:[#allocation2 + $0x46]]
    %v406 = vstv %s405
    %v407 = vmul.f32 %v330, %v406
    %v408 = vadd.f32 %v404, %v407
    %s409 = sld [smem:[#allocation2 + $0x4a]]
    %v410 = vstv %s409
    %v411 = vmul.f32 %v389, %v410
    %v412 = vadd.f32 %v408, %v411
    %s413 = sld [smem:[#allocation2 + $0x4e]]
    %v414 = vstv %s413
    %v415 = vadd.f32 %v412, %v414
    %v416 = vmul.f32 %v415, 0.5
    %v417 = vtanh.pop %v416
    %v418 = vadd.f32 %v417, 1.0
    %v419 = vmul.f32 %v418, 0.5
    %s420 = sld [smem:[#allocation2 + $0x37]]
    %v421 = vstv %s420
    %v422 = vmul.f32 %v94, %v421
    %s423 = sld [smem:[#allocation2 + $0x3b]]
    %v424 = vstv %s423
    %v425 = vmul.f32 %v153, %v424
    %v426 = vadd.f32 %v422, %v425
    %s427 = sld [smem:[#allocation2 + $0x3f]]
    %v428 = vstv %s427
    %v429 = vmul.f32 %v212, %v428
    %v430 = vadd.f32 %v426, %v429
    %s431 = sld [smem:[#allocation2 + $0x43]]
    %v432 = vstv %s431
    %v433 = vmul.f32 %v271, %v432
    %v434 = vadd.f32 %v430, %v433
    %s435 = sld [smem:[#allocation2 + $0x47]]
    %v436 = vstv %s435
    %v437 = vmul.f32 %v330, %v436
    %v438 = vadd.f32 %v434, %v437
    %s439 = sld [smem:[#allocation2 + $0x4b]]
    %v440 = vstv %s439
    %v441 = vmul.f32 %v389, %v440
    %v442 = vadd.f32 %v438, %v441
    %s443 = sld [smem:[#allocation2 + $0x4f]]
    %v444 = vstv %s443
    %v445 = vadd.f32 %v442, %v444
    %v446 = vmul.f32 %v445, 0.5
    %v447 = vtanh.pop %v446
    %v448 = vadd.f32 %v447, 1.0
    %v449 = vmul.f32 %v448, 0.5
    %s450 = sld [smem:[#allocation2 + $0x38]]
    %v451 = vstv %s450
    %v452 = vmul.f32 %v94, %v451
    %s453 = sld [smem:[#allocation2 + $0x3c]]
    %v454 = vstv %s453
    %v455 = vmul.f32 %v153, %v454
    %v456 = vadd.f32 %v452, %v455
    %s457 = sld [smem:[#allocation2 + $0x40]]
    %v458 = vstv %s457
    %v459 = vmul.f32 %v212, %v458
    %v460 = vadd.f32 %v456, %v459
    %s461 = sld [smem:[#allocation2 + $0x44]]
    %v462 = vstv %s461
    %v463 = vmul.f32 %v271, %v462
    %v464 = vadd.f32 %v460, %v463
    %s465 = sld [smem:[#allocation2 + $0x48]]
    %v466 = vstv %s465
    %v467 = vmul.f32 %v330, %v466
    %v468 = vadd.f32 %v464, %v467
    %s469 = sld [smem:[#allocation2 + $0x4c]]
    %v470 = vstv %s469
    %v471 = vmul.f32 %v389, %v470
    %v472 = vadd.f32 %v468, %v471
    %s473 = sld [smem:[#allocation2 + $0x50]]
    %v474 = vstv %s473
    %v475 = vadd.f32 %v472, %v474
    %v476 = vmul.f32 %v475, 0.5
    %v477 = vtanh.pop %v476
    %v478 = vadd.f32 %v477, 1.0
    %v479 = vmul.f32 %v478, 0.5
    %s480 = sld [smem:[#allocation2 + $0x39]]
    %v481 = vstv %s480
    %v482 = vmul.f32 %v94, %v481
    %s483 = sld [smem:[#allocation2 + $0x3d]]
    %v484 = vstv %s483
    %v485 = vmul.f32 %v153, %v484
    %v486 = vadd.f32 %v482, %v485
    %s487 = sld [smem:[#allocation2 + $0x41]]
    %v488 = vstv %s487
    %v489 = vmul.f32 %v212, %v488
    %v490 = vadd.f32 %v486, %v489
    %s491 = sld [smem:[#allocation2 + $0x45]]
    %v492 = vstv %s491
    %v493 = vmul.f32 %v271, %v492
    %v494 = vadd.f32 %v490, %v493
    %s495 = sld [smem:[#allocation2 + $0x49]]
    %v496 = vstv %s495
    %v497 = vmul.f32 %v330, %v496
    %v498 = vadd.f32 %v494, %v497
    %s499 = sld [smem:[#allocation2 + $0x4d]]
    %v500 = vstv %s499
    %v501 = vmul.f32 %v389, %v500
    %v502 = vadd.f32 %v498, %v501
    %s503 = sld [smem:[#allocation2 + $0x51]]
    %v504 = vstv %s503
    %v505 = vadd.f32 %v502, %v504
    %v506 = vmul.f32 %v505, 0.5
    %v507 = vtanh.pop %v506
    %v508 = vadd.f32 %v507, 1.0
    %v509 = vmul.f32 %v508, 0.5
    %s510 = sld [smem:[#allocation2 + $0x52]]
    %v511 = vstv %s510
    %v512 = vmul.f32 %v419, %v511
    %s513 = sld [smem:[#allocation2 + $0x53]]
    %v514 = vstv %s513
    %v515 = vmul.f32 %v449, %v514
    %v516 = vadd.f32 %v512, %v515
    %s517 = sld [smem:[#allocation2 + $0x54]]
    %v518 = vstv %s517
    %v519 = vmul.f32 %v479, %v518
    %v520 = vadd.f32 %v516, %v519
    %s521 = sld [smem:[#allocation2 + $0x55]]
    %v522 = vstv %s521
    %v523 = vmul.f32 %v509, %v522
    %v524 = vadd.f32 %v520, %v523
    %s525 = sld [smem:[#allocation2 + $0x56]]
    %v526 = vstv %s525
    %v527 = vadd.f32 %v524, %v526
    %v528 = vmul.f32 %v527, 0.5
    %v529 = vtanh.pop %v528
    %v530 = vadd.f32 %v529, 1.0
    %v531 = vmul.f32 %v530, 0.5
    %532 = vst [vmem:[#allocation7] sm:$0x1] %v531
    // Predicated region
    $region18: #{tpu_custom_call.1} parent=1 // pred_check
      _
    $region19: #{tpu_custom_call.1} parent=1 // pred_check_branch
      %534 = sbr.rel (0) target = $region21
    $region20: #{tpu_custom_call.1} parent=1 // pred_region
      %s536 = ssub.s32 16, 16
      %537 = vsyncadd [#allocation4], %s536
      %s539 = sshll.u32 [#allocation7], 4
      %s540 = int_to_ptr.vmem [resolvable:$true] %s539
      %542 = dma.vmem_to_hbm [thread:$0]  %s540, 16, %s2, [#allocation4]
    $region21: #{tpu_custom_call.1} parent=1 // pred_fallthru
      _
    // Predicated region
    $region22: #{tpu_custom_call.1} parent=1 // pred_check
      _
    $region23: #{tpu_custom_call.1} parent=1 // pred_check_branch
      %544 = sbr.rel (0) target = $region25
    $region24: #{tpu_custom_call.1} parent=1 // pred_region
      %545 = dma.done [#allocation4], 16
    $region25: #{tpu_custom_call.1} parent=1 // pred_fallthru
      _
    %546 = vsyncpa [#allocation3], 1
    %547 = vsyncpa [#allocation4], 1
    %548 = vsyncpa [#allocation5], 1

</llo_original>
